<compile_context>
chip_gen: v5e
topology: v5e:2x2
jax: 0.10.0
libtpu: 0.0.40
codegen_flags: <defaults>
</compile_context>

<pallas_src>
import jax
import jax.numpy as jnp
from jax import lax
from jax.experimental import pallas as pl
from jax.experimental.pallas import tpu as pltpu


# ----------------------------------------------------------------------------
# Fused kernel: squeeze + excitation + scale, one pass over a (bn, C, HW) block.
# ----------------------------------------------------------------------------
def _se_fused_kernel(x_ref, w1t_ref, b1_ref, w2t_ref, b2_ref, o_ref):
    x = x_ref[...]                                                   # (bn, C, HW) native dtype
    # Squeeze: f32 accumulation only; the big tile is never copied to f32.
    mean = jnp.mean(x, axis=-1, dtype=jnp.float32)                   # (bn, C)
    # Excitation: tiny f32 matmuls on the MXU, fully hidden under the x DMA.
    h = jnp.dot(mean, w1t_ref[...], preferred_element_type=jnp.float32,
                precision=lax.Precision.HIGHEST) + b1_ref[...]       # (bn, Cr)
    h = jnp.maximum(h, 0.0)
    s = jnp.dot(h, w2t_ref[...], preferred_element_type=jnp.float32,
                precision=lax.Precision.HIGHEST) + b2_ref[...]       # (bn, C)
    scale = jax.nn.sigmoid(s)                                        # (bn, C) f32
    # Scale: multiply in the input dtype, broadcast over the HW lanes.
    o_ref[...] = x * scale[..., None].astype(x.dtype)


# ----------------------------------------------------------------------------
# Chunked fallback kernel: broadcast multiply only (scale precomputed in XLA).
# ----------------------------------------------------------------------------
def _scale_mul_kernel(x_ref, s_ref, o_ref):
    x = x_ref[...]
    o_ref[...] = x * s_ref[...].astype(x.dtype)


# ----------------------------------------------------------------------------
# Helpers
# ----------------------------------------------------------------------------
def _vmem_limit(block_bytes, param_bytes):
    # x in + out, double-buffered, plus (double-buffered) params and slack.
    needed = 4 * block_bytes + 2 * param_bytes + (2 << 20)
    # Stay under v7x's 64 MiB/TC physical cap; also fine on v5e/v6e (128 MiB).
    return int(min(max(needed, 32 << 20), 56 << 20))


def _pick_bn(N, per_image_bytes, budget):
    """Images per fused block: largest divisor of N that fits `budget`,
    capped so the grid has >= 2 steps (keeps both v7x TCs busy)."""
    fit = max(1, min(N, budget // max(1, per_image_bytes)))
    if N > 1:
        fit = min(fit, max(1, N // 2))
    best = 1
    for d in range(1, fit + 1):
        if N % d == 0:
            best = d
    return best


def _pick_chunk(rows, row_bytes, budget):
    """Sublane-axis chunk size for the fallback: multiple of 8, or full extent."""
    fit = max(1, budget // max(1, row_bytes))
    if fit >= rows or rows <= 8:
        return rows
    return max(8, (min(fit, rows) // 8) * 8)


# ----------------------------------------------------------------------------
# Public wrapper
# ----------------------------------------------------------------------------
def se_module(x, w1, b1, w2, b2, *, max_fused_block_bytes=8 << 20, donate_x=False):
    """SE forward. x: (N, C, H, W) NCHW; w1: (Cr, C); b1: (Cr,); w2: (C, Cr); b2: (C,)."""
    N, C, H, W = x.shape
    Cr = w1.shape[0]
    HW = H * W
    itemsize = jnp.dtype(x.dtype).itemsize
    per_image_bytes = C * HW * itemsize
    alias = {0: 0} if donate_x else {}   # in-place multiply if caller donates x

    x2 = x.reshape(N, C, HW)             # reshape only: no data movement
    # Tiny params: transpose + cast to f32 once in the wrapper (cheap, and the
    # in-kernel excitation then matches the f32 reference path exactly).
    w1t = w1.T.astype(jnp.float32)                 # (C, Cr)
    w2t = w2.T.astype(jnp.float32)                 # (Cr, C)
    b1r = b1.reshape(1, Cr).astype(jnp.float32)    # (1, Cr)
    b2r = b2.reshape(1, C).astype(jnp.float32)     # (1, C)

    if per_image_bytes <= max_fused_block_bytes:
        # ---------------- fused single-pass path: bn images per grid step ---
        bn = _pick_bn(N, per_image_bytes, max_fused_block_bytes)
        block_bytes = bn * per_image_bytes
        param_bytes = (w1t.size + w2t.size + b1r.size + b2r.size) * 4
        out2 = pl.pallas_call(
            _se_fused_kernel,
            out_shape=jax.ShapeDtypeStruct((N, C, HW), x.dtype),
            grid_spec=pltpu.PrefetchScalarGridSpec(
                num_scalar_prefetch=0,
                grid=(N // bn,),
                in_specs=[
                    pl.BlockSpec((bn, C, HW), lambda b: (b, 0, 0)),   # x, bn images
                    pl.BlockSpec((C, Cr), lambda b: (0, 0)),          # fc1 weight^T
                    pl.BlockSpec((1, Cr), lambda b: (0, 0)),          # fc1 bias
                    pl.BlockSpec((Cr, C), lambda b: (0, 0)),          # fc2 weight^T
                    pl.BlockSpec((1, C), lambda b: (0, 0)),           # fc2 bias
                ],
                out_specs=pl.BlockSpec((bn, C, HW), lambda b: (b, 0, 0)),
            ),
            compiler_params=pltpu.CompilerParams(
                dimension_semantics=("parallel",),
                vmem_limit_bytes=_vmem_limit(block_bytes, param_bytes)),
            input_output_aliases=alias,
        )(x2, w1t, b1r, w2t, b2r)
        return out2.reshape(N, C, H, W)

    # ---------------- chunked fallback: one image exceeds the VMEM budget ---
    # Squeeze + excitation are tiny; run them as plain XLA (bandwidth-optimal
    # reduce over x), then stream the broadcast multiply through Pallas in
    # C-chunks with a 2-D parallel grid.
    # TODO(synk): a fully fused two-pass manual-DMA variant (sum pass + scale
    # pass over HW chunks via pl.ANY + make_async_copy) would save the extra
    # HBM read of x that the XLA mean costs.
    mean = jnp.mean(x2, axis=-1, dtype=jnp.float32)                          # (N, C)
    h = jnp.maximum(jnp.matmul(mean, w1t, precision=lax.Precision.HIGHEST) + b1r, 0.0)
    s = jnp.matmul(h, w2t, precision=lax.Precision.HIGHEST) + b2r
    scale = jax.nn.sigmoid(s)                                                # (N, C)
    s2 = scale.reshape(N, C, 1)

    chunk = _pick_chunk(C, HW * itemsize, max_fused_block_bytes)
    n_chunks = pl.cdiv(C, chunk)
    out2 = pl.pallas_call(
        _scale_mul_kernel,
        out_shape=jax.ShapeDtypeStruct((N, C, HW), x.dtype),
        grid_spec=pltpu.PrefetchScalarGridSpec(
            num_scalar_prefetch=0,
            grid=(N, n_chunks),
            in_specs=[
                pl.BlockSpec((None, chunk, HW), lambda n, c: (n, c, 0)),
                pl.BlockSpec((None, chunk, 1), lambda n, c: (n, c, 0)),
            ],
            out_specs=pl.BlockSpec((None, chunk, HW), lambda n, c: (n, c, 0)),
        ),
        compiler_params=pltpu.CompilerParams(
            dimension_semantics=("parallel", "parallel"),
            vmem_limit_bytes=_vmem_limit(chunk * HW * itemsize, 0)),
        input_output_aliases=alias,
    )(x2, s2)
    return out2.reshape(N, C, H, W)


# ----------------------------------------------------------------------------
# Pure-JAX reference matching the PyTorch forward.
# ----------------------------------------------------------------------------
def se_module_ref(x, w1, b1, w2, b2):
    mean = jnp.mean(x, axis=(2, 3), dtype=jnp.float32)
    h = jnp.maximum(
        jnp.matmul(mean, w1.astype(jnp.float32).T,
                   precision=lax.Precision.HIGHEST) + b1.astype(jnp.float32), 0.0)
    s = jnp.matmul(h, w2.astype(jnp.float32).T,
                   precision=lax.Precision.HIGHEST) + b2.astype(jnp.float32)
    scale = jax.nn.sigmoid(s)
    return x * scale.astype(x.dtype)[:, :, None, None]


if __name__ == "__main__":
    key = jax.random.PRNGKey(0)

    def make_inputs(k, N, C, H, W, reduction):
        Cr = C // reduction
        kx, k1, kb1, k2, kb2 = jax.random.split(k, 5)
        x = jax.random.normal(kx, (N, C, H, W), dtype=jnp.float32)
        w1 = jax.random.normal(k1, (Cr, C), dtype=jnp.float32) * 0.1
        b1 = jax.random.normal(kb1, (Cr,), dtype=jnp.float32) * 0.1
        w2 = jax.random.normal(k2, (C, Cr), dtype=jnp.float32) * 0.1
        b2 = jax.random.normal(kb2, (C,), dtype=jnp.float32) * 0.1
        return x, w1, b1, w2, b2

    # Exercise all code paths at small shapes:
    #   1) fused, bn=1                      2) fused, bn>1 (batched block)
    #   3) fused, lane-hostile HW (deep-stage shape, native layout)
    #   4) chunked fallback (forced via a tiny VMEM block budget)
    cases = [
        (dict(N=2, C=4, H=16, W=16, reduction=2), {}),
        (dict(N=8, C=64, H=8, W=8, reduction=8), {}),
        (dict(N=2, C=256, H=8, W=8, reduction=16), {}),
        (dict(N=2, C=256, H=8, W=8, reduction=16),
         {"max_fused_block_bytes": 32 * 1024}),
    ]

    keys = jax.random.split(key, len(cases))
    for (shapes, kwargs), k in zip(cases, keys):
        x, w1, b1, w2, b2 = make_inputs(k, **shapes)
        out = jax.block_until_ready(se_module(x, w1, b1, w2, b2, **kwargs))
        ref = se_module_ref(x, w1, b1, w2, b2)
        assert out.shape == x.shape
        assert jnp.allclose(out, ref, atol=1e-4, rtol=1e-4), \
            f"mismatch vs reference: {shapes} {kwargs}"

    print("KERNEL_OK")
</pallas_src>

<mosaic_0001>
module attributes {stable_mosaic.version = 11 : i64} {
  func.func @_se_fused_kernel(%arg0: i32, %arg1: memref<1x4x256xf32, #tpu.memory_space<vmem>>, %arg2: memref<4x2xf32, #tpu.memory_space<vmem>>, %arg3: memref<1x2xf32, #tpu.memory_space<vmem>>, %arg4: memref<2x4xf32, #tpu.memory_space<vmem>>, %arg5: memref<1x4xf32, #tpu.memory_space<vmem>>, %arg6: memref<1x4x256xf32, #tpu.memory_space<vmem>>) attributes {dimension_semantics = [#tpu.dimension_semantics<parallel>], iteration_bounds = array<i64: 2>, scalar_prefetch = 0 : i64, scratch_operands = 0 : i64, tpu.core_type = #tpu.core_type<tc>, window_params = [{transform_indices = @transform_0, window_bounds = array<i64: 1, 4, 256>}, {pipeline_mode = #tpu.pipeline_mode<synchronous>, transform_indices = @transform_1, window_bounds = array<i64: 4, 2>}, {pipeline_mode = #tpu.pipeline_mode<synchronous>, transform_indices = @transform_2, window_bounds = array<i64: 1, 2>}, {pipeline_mode = #tpu.pipeline_mode<synchronous>, transform_indices = @transform_3, window_bounds = array<i64: 2, 4>}, {pipeline_mode = #tpu.pipeline_mode<synchronous>, transform_indices = @transform_4, window_bounds = array<i64: 1, 4>}, {transform_indices = @transform_5, window_bounds = array<i64: 1, 4, 256>}]} {
    %c0 = arith.constant 0 : index
    %c0_0 = arith.constant 0 : index
    %c0_1 = arith.constant 0 : index
    %0 = vector.load %arg1[%c0, %c0_0, %c0_1] : memref<1x4x256xf32, #tpu.memory_space<vmem>>, vector<1x4x256xf32>
    %cst = arith.constant dense<0.000000e+00> : vector<1x4xf32>
    %1 = vector.multi_reduction <add>, %0, %cst [2] : vector<1x4x256xf32> to vector<1x4xf32>
    %cst_2 = arith.constant 2.560000e+02 : f32
    %2 = vector.broadcast %cst_2 : f32 to vector<1x4xf32>
    %3 = arith.divf %1, %2 : vector<1x4xf32>
    %c0_3 = arith.constant 0 : index
    %c0_4 = arith.constant 0 : index
    %4 = vector.load %arg2[%c0_3, %c0_4] : memref<4x2xf32, #tpu.memory_space<vmem>>, vector<4x2xf32>
    %cst_5 = arith.constant dense<0.000000e+00> : vector<1x2xf32>
    %5 = tpu.matmul %3, %4, %cst_5 {dimension_numbers = #tpu.dot_dimension_numbers<[1], [0], [0], [1], [0, 0, 1, 1], [], []>, precision = #tpu.contract_precision<fp32>} : vector<1x4xf32>, vector<4x2xf32>, vector<1x2xf32> -> vector<1x2xf32>
    %c0_6 = arith.constant 0 : index
    %c0_7 = arith.constant 0 : index
    %6 = vector.load %arg3[%c0_6, %c0_7] : memref<1x2xf32, #tpu.memory_space<vmem>>, vector<1x2xf32>
    %7 = arith.addf %5, %6 : vector<1x2xf32>
    %cst_8 = arith.constant 0.000000e+00 : f32
    %8 = vector.broadcast %cst_8 : f32 to vector<1x2xf32>
    %9 = arith.maximumf %7, %8 : vector<1x2xf32>
    %c0_9 = arith.constant 0 : index
    %c0_10 = arith.constant 0 : index
    %10 = vector.load %arg4[%c0_9, %c0_10] : memref<2x4xf32, #tpu.memory_space<vmem>>, vector<2x4xf32>
    %cst_11 = arith.constant dense<0.000000e+00> : vector<1x4xf32>
    %11 = tpu.matmul %9, %10, %cst_11 {dimension_numbers = #tpu.dot_dimension_numbers<[1], [0], [0], [1], [0, 0, 1, 1], [], []>, precision = #tpu.contract_precision<fp32>} : vector<1x2xf32>, vector<2x4xf32>, vector<1x4xf32> -> vector<1x4xf32>
    %c0_12 = arith.constant 0 : index
    %c0_13 = arith.constant 0 : index
    %12 = vector.load %arg5[%c0_12, %c0_13] : memref<1x4xf32, #tpu.memory_space<vmem>>, vector<1x4xf32>
    %13 = arith.addf %11, %12 : vector<1x4xf32>
    %14 = arith.negf %13 : vector<1x4xf32>
    %15 = math.exp %14 : vector<1x4xf32>
    %cst_14 = arith.constant 1.000000e+00 : f32
    %16 = vector.broadcast %cst_14 : f32 to vector<1x4xf32>
    %17 = arith.addf %16, %15 : vector<1x4xf32>
    %18 = arith.divf %16, %17 : vector<1x4xf32>
    %19 = vector.shape_cast %18 : vector<1x4xf32> to vector<1x4x1xf32>
    %20 = vector.broadcast %19 : vector<1x4x1xf32> to vector<1x4x256xf32>
    %21 = arith.mulf %0, %20 : vector<1x4x256xf32>
    %c0_15 = arith.constant 0 : index
    %c0_16 = arith.constant 0 : index
    %c0_17 = arith.constant 0 : index
    %22 = vector.load %arg6[%c0_15, %c0_16, %c0_17] : memref<1x4x256xf32, #tpu.memory_space<vmem>>, vector<1x4x256xf32>
    tpu.vector_store %arg6[%c0_15, %c0_16, %c0_17], %21 {strides = array<i32>} : memref<1x4x256xf32, #tpu.memory_space<vmem>>, vector<1x4x256xf32>,
    return
  }
  func.func @transform_0(%arg0: i32) -> (i32, i32, i32) {
    %c0_i32 = arith.constant 0 : i32
    %c0_i32_0 = arith.constant 0 : i32
    %c0_i32_1 = arith.constant 0 : i32
    return %arg0, %c0_i32, %c0_i32_0 : i32, i32, i32
  }
  func.func @transform_1(%arg0: i32) -> (i32, i32) {
    %c0_i32 = arith.constant 0 : i32
    %c0_i32_0 = arith.constant 0 : i32
    %c0_i32_1 = arith.constant 0 : i32
    return %c0_i32, %c0_i32_0 : i32, i32
  }
  func.func @transform_2(%arg0: i32) -> (i32, i32) {
    %c0_i32 = arith.constant 0 : i32
    %c0_i32_0 = arith.constant 0 : i32
    %c0_i32_1 = arith.constant 0 : i32
    return %c0_i32, %c0_i32_0 : i32, i32
  }
  func.func @transform_3(%arg0: i32) -> (i32, i32) {
    %c0_i32 = arith.constant 0 : i32
    %c0_i32_0 = arith.constant 0 : i32
    %c0_i32_1 = arith.constant 0 : i32
    return %c0_i32, %c0_i32_0 : i32, i32
  }
  func.func @transform_4(%arg0: i32) -> (i32, i32) {
    %c0_i32 = arith.constant 0 : i32
    %c0_i32_0 = arith.constant 0 : i32
    %c0_i32_1 = arith.constant 0 : i32
    return %c0_i32, %c0_i32_0 : i32, i32
  }
  func.func @transform_5(%arg0: i32) -> (i32, i32, i32) {
    %c0_i32 = arith.constant 0 : i32
    %c0_i32_0 = arith.constant 0 : i32
    %c0_i32_1 = arith.constant 0 : i32
    return %arg0, %c0_i32, %c0_i32_0 : i32, i32, i32
  }
}

</mosaic_0001>

<llo_original>
// kernel: tpu_custom_call.1
$region0: #{tpu_custom_call.1}
  #allocation0 [shape = 'u32[]', space=smem, size = 0x4, offset = 0x4, fixed_abs, tag = 'smem constant byte address 0x4 - core index']
  #allocation1 [shape = 'u32[72,128]{1,0:T(1,128)}', space=vmem, size = 0x9000, scoped, tag = 'internal scratch']
  %s0 = inlined_call_operand.hbm [shape: f32[2,4,256], index: 0, kind: input, shape index: {}]
  %s1 = inlined_call_operand.vmem [shape: f32[4,2], index: 1, kind: input, shape index: {}]
  %s2 = inlined_call_operand.vmem [shape: f32[1,2], index: 2, kind: input, shape index: {}]
  %s3 = inlined_call_operand.vmem [shape: f32[2,4], index: 3, kind: input, shape index: {}]
  %s4 = inlined_call_operand.vmem [shape: f32[1,4], index: 4, kind: input, shape index: {}]
  %s5 = inlined_call_operand.hbm [shape: f32[2,4,256], index: 5, kind: output, shape index: {}]
  %s6 = sld [smem:[#allocation0]]
  $region57: #{tpu_custom_call.1} parent=0
    _
  %s8 = ssub.s32 1, %s6
  %s9 = scalar_select 0, %s8, %s6
  $region1: #{tpu_custom_call.1} parent=0
    #allocation2 [shape = 'u8[8192]{0}', space=vmem, size = 0x2000, scoped, tag = 'input window, operand 0']
    #allocation3 [shape = 's32[2]{0}', space=sflag, size = 0x8, scoped, tag = 'scoped memory for tpu_custom_call.1']
    #allocation4 [shape = 's32[2]{0}', space=sflag, size = 0x8, scoped, tag = 'scoped memory for tpu_custom_call.1']
    #allocation5 [shape = 'u8[8192]{0}', space=vmem, size = 0x2000, scoped, tag = 'output window, operand 0']
    %10 = vsyncpa [#allocation3], 0
    %s11 = scalar_lea.sflag [#allocation3], 1
    %12 = vsyncpa %s11, 0
    %13 = vsyncpa [#allocation4], 0
    %s14 = scalar_lea.sflag [#allocation4], 1
    %15 = vsyncpa %s14, 0
    loop: start=0, step=1, limit=4
    $region2: #{tpu_custom_call.1} parent=1 // loop_pre_header
      _
    $region3: #{tpu_custom_call.1} parent=1 // loop_header
      %s17 = sphi 0, %s21
      %p18 = scmp.ge.s32.totalorder %s17, 4
      %s27 = sphi 0, %s29
      %s30 = sphi 0, %s27
      %s31 = sphi 0, %s30
      %s47 = sphi 0, %s31
      %s51 = sphi 0, %s51
      %s53 = sphi 0, %s51
      %s54 = sphi 0, %s53
      %s68 = sphi 0, %s54
      %s72 = sphi 0, %s72
      %s74 = sphi 0, %s72
      %s75 = sphi 0, %s74
      %s89 = sphi 0, %s75
      %s93 = sphi 0, %s93
      %s95 = sphi 0, %s93
      %s96 = sphi 0, %s95
      %s110 = sphi 0, %s96
      %s114 = sphi 0, %s114
      %s116 = sphi 0, %s114
      %s117 = sphi 0, %s116
      %s131 = sphi 0, %s117
      %s137 = sphi 0, %s139
      %s140 = sphi 0, %s137
      %s141 = sphi 0, %s140
      %s157 = sphi 0, %s141
    $region4: #{tpu_custom_call.1} parent=1 // loop_header_branch
      %20 = sbr.rel (%p18) target = $region8
    $region5: #{tpu_custom_call.1} parent=1 // loop_body
      %s22 = ssub.s32 %s17, 1
      %s23 = ssub.s32 %s17, 2
      %s24 = sadd.s32 %s17, 1
      %s25 = ssub.s32 %s17, %s24
      %p26 = scmp.eq.s32.totalorder %s25, 0
      %s28 = sadd.s32 %s27, 1
      %s29 = scalar_select %p26, %s27, %s28
      %p32 = pneg %p26
      %p33 = scmp.eq.s32.totalorder %s17, 1
      %p34 = por %p32, %p33
      %p35 = scmp.ne.s32.totalorder %s27, %s30
      %p36 = scmp.eq.s32.totalorder %s17, 0
      %p37 = por %p35, %p36
      %p38 = scmp.ne.s32.totalorder %s27, %s30
      %p39 = scmp.eq.s32.totalorder %s22, 1
      %p40 = por %p38, %p39
      %p41 = scmp.ne.s32.totalorder %s30, %s31
      %p42 = scmp.eq.s32.totalorder %s22, 0
      %p43 = por %p41, %p42
      %p44 = scmp.ne.s32.totalorder %s30, %s31
      %p45 = scmp.eq.s32.totalorder %s23, 1
      %p46 = por %p44, %p45
      %p48 = scmp.ne.s32.totalorder %s31, %s47
      %p49 = scmp.eq.s32.totalorder %s23, 0
      %p50 = por %p48, %p49
      %s52 = sadd.s32 %s51, 1
      %p55 = scmp.eq.s32.totalorder %s17, 1
      %p56 = scmp.ne.s32.totalorder %s51, %s53
      %p57 = scmp.eq.s32.totalorder %s17, 0
      %p58 = por %p56, %p57
      %p59 = scmp.ne.s32.totalorder %s51, %s53
      %p60 = scmp.eq.s32.totalorder %s22, 1
      %p61 = por %p59, %p60
      %p62 = scmp.ne.s32.totalorder %s53, %s54
      %p63 = scmp.eq.s32.totalorder %s22, 0
      %p64 = por %p62, %p63
      %p65 = scmp.ne.s32.totalorder %s53, %s54
      %p66 = scmp.eq.s32.totalorder %s23, 1
      %p67 = por %p65, %p66
      %p69 = scmp.ne.s32.totalorder %s54, %s68
      %p70 = scmp.eq.s32.totalorder %s23, 0
      %p71 = por %p69, %p70
      %s73 = sadd.s32 %s72, 1
      %p76 = scmp.eq.s32.totalorder %s17, 1
      %p77 = scmp.ne.s32.totalorder %s72, %s74
      %p78 = scmp.eq.s32.totalorder %s17, 0
      %p79 = por %p77, %p78
      %p80 = scmp.ne.s32.totalorder %s72, %s74
      %p81 = scmp.eq.s32.totalorder %s22, 1
      %p82 = por %p80, %p81
      %p83 = scmp.ne.s32.totalorder %s74, %s75
      %p84 = scmp.eq.s32.totalorder %s22, 0
      %p85 = por %p83, %p84
      %p86 = scmp.ne.s32.totalorder %s74, %s75
      %p87 = scmp.eq.s32.totalorder %s23, 1
      %p88 = por %p86, %p87
      %p90 = scmp.ne.s32.totalorder %s75, %s89
      %p91 = scmp.eq.s32.totalorder %s23, 0
      %p92 = por %p90, %p91
      %s94 = sadd.s32 %s93, 1
      %p97 = scmp.eq.s32.totalorder %s17, 1
      %p98 = scmp.ne.s32.totalorder %s93, %s95
      %p99 = scmp.eq.s32.totalorder %s17, 0
      %p100 = por %p98, %p99
      %p101 = scmp.ne.s32.totalorder %s93, %s95
      %p102 = scmp.eq.s32.totalorder %s22, 1
      %p103 = por %p101, %p102
      %p104 = scmp.ne.s32.totalorder %s95, %s96
      %p105 = scmp.eq.s32.totalorder %s22, 0
      %p106 = por %p104, %p105
      %p107 = scmp.ne.s32.totalorder %s95, %s96
      %p108 = scmp.eq.s32.totalorder %s23, 1
      %p109 = por %p107, %p108
      %p111 = scmp.ne.s32.totalorder %s96, %s110
      %p112 = scmp.eq.s32.totalorder %s23, 0
      %p113 = por %p111, %p112
      %s115 = sadd.s32 %s114, 1
      %p118 = scmp.eq.s32.totalorder %s17, 1
      %p119 = scmp.ne.s32.totalorder %s114, %s116
      %p120 = scmp.eq.s32.totalorder %s17, 0
      %p121 = por %p119, %p120
      %p122 = scmp.ne.s32.totalorder %s114, %s116
      %p123 = scmp.eq.s32.totalorder %s22, 1
      %p124 = por %p122, %p123
      %p125 = scmp.ne.s32.totalorder %s116, %s117
      %p126 = scmp.eq.s32.totalorder %s22, 0
      %p127 = por %p125, %p126
      %p128 = scmp.ne.s32.totalorder %s116, %s117
      %p129 = scmp.eq.s32.totalorder %s23, 1
      %p130 = por %p128, %p129
      %p132 = scmp.ne.s32.totalorder %s117, %s131
      %p133 = scmp.eq.s32.totalorder %s23, 0
      %p134 = por %p132, %p133
      %s135 = ssub.s32 %s17, %s24
      %p136 = scmp.eq.s32.totalorder %s135, 0
      %s138 = sadd.s32 %s137, 1
      %s139 = scalar_select %p136, %s137, %s138
      %p142 = pneg %p136
      %p143 = scmp.eq.s32.totalorder %s17, 1
      %p144 = por %p142, %p143
      %p145 = scmp.ne.s32.totalorder %s137, %s140
      %p146 = scmp.eq.s32.totalorder %s17, 0
      %p147 = por %p145, %p146
      %p148 = scmp.ne.s32.totalorder %s137, %s140
      %p149 = scmp.eq.s32.totalorder %s22, 1
      %p150 = por %p148, %p149
      %p151 = scmp.ne.s32.totalorder %s140, %s141
      %p152 = scmp.eq.s32.totalorder %s22, 0
      %p153 = por %p151, %p152
      %p154 = scmp.ne.s32.totalorder %s140, %s141
      %p155 = scmp.eq.s32.totalorder %s23, 1
      %p156 = por %p154, %p155
      %p158 = scmp.ne.s32.totalorder %s141, %s157
      %p159 = scmp.eq.s32.totalorder %s23, 0
      %p160 = por %p158, %p159
      %p161 = scmp.le.s32.totalorder 1, %s17
      %p162 = scmp.lt.s32.totalorder %s17, 3
      %p163 = pnand %p161, %p162
      %p164 = pneg %p163
      // Predicated region
      $region9: #{tpu_custom_call.1} parent=5 // pred_check
        _
      $region10: #{tpu_custom_call.1} parent=5 // pred_check_branch
        %166 = sbr.rel (%p163) target = $region12
      $region11: #{tpu_custom_call.1} parent=5 // pred_region
        %s167 = ssub.s32 %s17, 1
        // Predicated region
        $region13: #{tpu_custom_call.1} parent=11 // pred_check
          %p168 = pneg %p64
        $region14: #{tpu_custom_call.1} parent=11 // pred_check_branch
          %170 = sbr.rel (%p168) target = $region16
        $region15: #{tpu_custom_call.1} parent=11 // pred_region
          _
        $region16: #{tpu_custom_call.1} parent=11 // pred_fallthru
          _
        // Predicated region
        $region17: #{tpu_custom_call.1} parent=11 // pred_check
          %p171 = pneg %p85
        $region18: #{tpu_custom_call.1} parent=11 // pred_check_branch
          %173 = sbr.rel (%p171) target = $region20
        $region19: #{tpu_custom_call.1} parent=11 // pred_region
          _
        $region20: #{tpu_custom_call.1} parent=11 // pred_fallthru
          _
        // Predicated region
        $region21: #{tpu_custom_call.1} parent=11 // pred_check
          %p174 = pneg %p106
        $region22: #{tpu_custom_call.1} parent=11 // pred_check_branch
          %176 = sbr.rel (%p174) target = $region24
        $region23: #{tpu_custom_call.1} parent=11 // pred_region
          _
        $region24: #{tpu_custom_call.1} parent=11 // pred_fallthru
          _
        // Predicated region
        $region25: #{tpu_custom_call.1} parent=11 // pred_check
          %p177 = pneg %p127
        $region26: #{tpu_custom_call.1} parent=11 // pred_check_branch
          %179 = sbr.rel (%p177) target = $region28
        $region27: #{tpu_custom_call.1} parent=11 // pred_region
          _
        $region28: #{tpu_custom_call.1} parent=11 // pred_fallthru
          _
      $region12: #{tpu_custom_call.1} parent=5 // pred_fallthru
        _
      %p180 = scmp.lt.s32.totalorder %s17, 2
      // Predicated region
      $region29: #{tpu_custom_call.1} parent=5 // pred_check
        %p181 = pneg %p180
      $region30: #{tpu_custom_call.1} parent=5 // pred_check_branch
        %183 = sbr.rel (%p181) target = $region32
      $region31: #{tpu_custom_call.1} parent=5 // pred_region
        // Predicated region
        $region33: #{tpu_custom_call.1} parent=31 // pred_check
          %p184 = pneg %p37
        $region34: #{tpu_custom_call.1} parent=31 // pred_check_branch
          %186 = sbr.rel (%p184) target = $region36
        $region35: #{tpu_custom_call.1} parent=31 // pred_region
          %s187 = sand.u32 %s27, 1
          %s188 = scalar_lea.sflag [#allocation3], %s187
          %s189 = sand.u32 %s27, 1
          %s190 = smul.addr %s189, 8
          %s191 = scalar_lea.vmem [#allocation2], %s190
          %193 = vsyncadd %s188, 0
          %s194 = smul.addr %s17, 2
          %s195 = smul.addr %s194, 4
          %s196 = scalar_lea.hbm %s0, %s195
          %s198 = sshll.u32 %s196, 4
          %s199 = int_to_ptr.hbm [resolvable:$true] %s198
          %s200 = sshll.u32 %s191, 4
          %s201 = int_to_ptr.vmem [resolvable:$true] %s200
          %203 = dma.hbm_to_vmem [thread:$0]  %s199, 128, %s201, %s188
        $region36: #{tpu_custom_call.1} parent=31 // pred_fallthru
          _
      $region32: #{tpu_custom_call.1} parent=5 // pred_fallthru
        _
      %p204 = scmp.le.s32.totalorder 1, %s17
      %p205 = scmp.lt.s32.totalorder %s17, 3
      %p206 = pnand %p204, %p205
      %p207 = pneg %p206
      // Predicated region
      $region37: #{tpu_custom_call.1} parent=5 // pred_check
        _
      $region38: #{tpu_custom_call.1} parent=5 // pred_check_branch
        %209 = sbr.rel (%p206) target = $region40
      $region39: #{tpu_custom_call.1} parent=5 // pred_region
        %s210 = ssub.s32 %s17, 1
        %s211 = sand.u32 %s30, 1
        %s212 = scalar_lea.sflag [#allocation3], %s211
        %s213 = sand.u32 %s30, 1
        %s214 = smul.addr %s213, 8
        %s215 = scalar_lea.vmem [#allocation2], %s214
        // Predicated region
        $region41: #{tpu_custom_call.1} parent=39 // pred_check
          %p216 = pneg %p43
        $region42: #{tpu_custom_call.1} parent=39 // pred_check_branch
          %218 = sbr.rel (%p216) target = $region44
        $region43: #{tpu_custom_call.1} parent=39 // pred_region
          %220 = dma.done %s212, 128
        $region44: #{tpu_custom_call.1} parent=39 // pred_fallthru
          _
        %s221 = sand.u32 %s30, 1
        %s222 = scalar_lea.sflag [#allocation3], %s221
        %s223 = sand.u32 %s30, 1
        %s224 = smul.addr %s223, 8
        %s225 = scalar_lea.vmem [#allocation2], %s224
        %p226 = pneg %p43
        %p227 = pneg %p40
        %p228 = pneg %p64
        %p229 = pneg %p61
        %p230 = pneg %p85
        %p231 = pneg %p82
        %p232 = pneg %p106
        %p233 = pneg %p103
        %p234 = pneg %p127
        %p235 = pneg %p124
        %p236 = pneg %p153
        %p237 = pneg %p150
        %s238 = sand.u32 %s140, 1
        %s239 = scalar_lea.sflag [#allocation4], %s238
        %s240 = sand.u32 %s140, 1
        %s241 = smul.addr %s240, 8
        %s242 = scalar_lea.vmem [#allocation5], %s241
        %v243 = vld [vmem:[%s215] sm:$0xff]
        %245 = vst [vmem:[#allocation1] ss:$2 sm:$0xff] %v243
        %v246 = vld.sshfl [vmem:[#allocation1] sm:$0xff pattern:$0x75316420]
        %v247 = vld.sshfl [vmem:[#allocation1 + $0x8] sm:$0xff pattern:$0x75316420]
        %vm250 = vcmask 1043456
        %v251 = vsel %vm250, %v246, 0.0
        %v252 = vsel %vm250, %v247, 0.0
        %v253 = vadd.f32 %v251, %v252
        %254 = vadd.xlane.f32.xlu0 %v253
        %v255 = vpop.xlane.xlu0 %254
        %v256 = vrcp.pop 256.0
        %v257 = vmul.f32 256.0, %v256
        %v258 = vsub.f32 1.0, %v257
        %v259 = vmul.f32 %v256, %v258
        %v260 = vadd.f32 %v256, %v259
        %vm261 = vweird.f32 %v256
        %v262 = vsel %vm261, %v256, %v260
        %v263 = vmul.f32 %v255, %v262
        %v264 = vld [vmem:[%s1] sm:$0xf]
        %v265 = vld [vmem:[%s2] sm:$0x1]
        %v267 = vlaneseq
        %v268 = vand.u32 %v267, 127
        %v269 = vperm.slane %v263, %v268
        %vm270 = vcmask 31744
        %v271 = vsel %vm270, %v269, 0
        %v274 = vsel %vm250, %v264, 0
        %276 = vmatpush.msra.mxu0 0.0
        %277 = vmatpush.msra.mxu0 0.0
        %278 = vmatpush.msra.mxu0 0.0
        %279 = vmatpush.msra.mxu0 0.0
        %280 = vmatpush.msra.mxu0 0.0
        %281 = vmatpush.msra.mxu0 0.0
        %282 = vmatpush.msra.mxu0 0.0
        %283 = vmatpush.msra.mxu0 0.0
        %284 = vmatpush.msra.mxu0 0.0
        %285 = vmatpush.msra.mxu0 0.0
        %286 = vmatpush.msra.mxu0 0.0
        %287 = vmatpush.msra.mxu0 0.0
        %288 = vmatpush.msra.mxu0 0.0
        %289 = vmatpush.msra.mxu0 0.0
        %290 = vmatpush.msra.mxu0 0.0
        %v291 = vand.u32 %v274, 4294901760
        %292 = vmatpush.msra.mxu0 %v291
        %v293 = vand.u32 %v271, 4294901760
        %v294 = vsub.f32 %v271, %v293
        %v295 = vand.u32 %v294, 4294901760
        %v296 = vsub.f32 %v294, %v295
        %v297 = vand.u32 %v296, 4294901760
        %298 = vmatmul.f32.gmra.mxu0 %v297
        %v299 = vpop.f32.mrf.mxu0
        %v300 = vadd.f32 %v265, %v299
        %301 = vdwg.mxu0
        %302 = vmatpush.msra.mxu0 0.0
        %303 = vmatpush.msra.mxu0 0.0
        %304 = vmatpush.msra.mxu0 0.0
        %305 = vmatpush.msra.mxu0 0.0
        %306 = vmatpush.msra.mxu0 0.0
        %307 = vmatpush.msra.mxu0 0.0
        %308 = vmatpush.msra.mxu0 0.0
        %309 = vmatpush.msra.mxu0 0.0
        %310 = vmatpush.msra.mxu0 0.0
        %311 = vmatpush.msra.mxu0 0.0
        %312 = vmatpush.msra.mxu0 0.0
        %313 = vmatpush.msra.mxu0 0.0
        %314 = vmatpush.msra.mxu0 0.0
        %315 = vmatpush.msra.mxu0 0.0
        %316 = vmatpush.msra.mxu0 0.0
        %v317 = vand.u32 %v274, 4294901760
        %v318 = vsub.f32 %v274, %v317
        %v319 = vand.u32 %v318, 4294901760
        %v320 = vsub.f32 %v318, %v319
        %v321 = vand.u32 %v320, 4294901760
        %322 = vmatpush.msra.mxu0 %v321
        %v323 = vand.u32 %v271, 4294901760
        %324 = vmatmul.f32.gmra.mxu0 %v323
        %v325 = vpop.f32.mrf.mxu0
        %v326 = vadd.f32 %v300, %v325
        %327 = vdwg.mxu0
        %328 = vmatpush.msra.mxu0 0.0
        %329 = vmatpush.msra.mxu0 0.0
        %330 = vmatpush.msra.mxu0 0.0
        %331 = vmatpush.msra.mxu0 0.0
        %332 = vmatpush.msra.mxu0 0.0
        %333 = vmatpush.msra.mxu0 0.0
        %334 = vmatpush.msra.mxu0 0.0
        %335 = vmatpush.msra.mxu0 0.0
        %336 = vmatpush.msra.mxu0 0.0
        %337 = vmatpush.msra.mxu0 0.0
        %338 = vmatpush.msra.mxu0 0.0
        %339 = vmatpush.msra.mxu0 0.0
        %340 = vmatpush.msra.mxu0 0.0
        %341 = vmatpush.msra.mxu0 0.0
        %342 = vmatpush.msra.mxu0 0.0
        %v343 = vand.u32 %v274, 4294901760
        %v344 = vsub.f32 %v274, %v343
        %345 = vmatpush.msra.mxu0 %v344
        %v346 = vand.u32 %v271, 4294901760
        %v347 = vsub.f32 %v271, %v346
        %348 = vmatmul.f32.gmra.mxu0 %v347
        %v349 = vpop.f32.mrf.mxu0
        %v350 = vadd.f32 %v326, %v349
        %351 = vdwg.mxu0
        %352 = vmatpush.msra.mxu0 0.0
        %353 = vmatpush.msra.mxu0 0.0
        %354 = vmatpush.msra.mxu0 0.0
        %355 = vmatpush.msra.mxu0 0.0
        %356 = vmatpush.msra.mxu0 0.0
        %357 = vmatpush.msra.mxu0 0.0
        %358 = vmatpush.msra.mxu0 0.0
        %359 = vmatpush.msra.mxu0 0.0
        %360 = vmatpush.msra.mxu0 0.0
        %361 = vmatpush.msra.mxu0 0.0
        %362 = vmatpush.msra.mxu0 0.0
        %363 = vmatpush.msra.mxu0 0.0
        %364 = vmatpush.msra.mxu0 0.0
        %365 = vmatpush.msra.mxu0 0.0
        %366 = vmatpush.msra.mxu0 0.0
        %v367 = vand.u32 %v274, 4294901760
        %368 = vmatpush.msra.mxu0 %v367
        %v369 = vand.u32 %v271, 4294901760
        %v370 = vsub.f32 %v271, %v369
        %v371 = vand.u32 %v370, 4294901760
        %372 = vmatmul.f32.gmra.mxu0 %v371
        %v373 = vpop.f32.mrf.mxu0
        %v374 = vadd.f32 %v350, %v373
        %375 = vdwg.mxu0
        %376 = vmatpush.msra.mxu0 0.0
        %377 = vmatpush.msra.mxu0 0.0
        %378 = vmatpush.msra.mxu0 0.0
        %379 = vmatpush.msra.mxu0 0.0
        %380 = vmatpush.msra.mxu0 0.0
        %381 = vmatpush.msra.mxu0 0.0
        %382 = vmatpush.msra.mxu0 0.0
        %383 = vmatpush.msra.mxu0 0.0
        %384 = vmatpush.msra.mxu0 0.0
        %385 = vmatpush.msra.mxu0 0.0
        %386 = vmatpush.msra.mxu0 0.0
        %387 = vmatpush.msra.mxu0 0.0
        %388 = vmatpush.msra.mxu0 0.0
        %389 = vmatpush.msra.mxu0 0.0
        %390 = vmatpush.msra.mxu0 0.0
        %v391 = vand.u32 %v274, 4294901760
        %v392 = vsub.f32 %v274, %v391
        %v393 = vand.u32 %v392, 4294901760
        %394 = vmatpush.msra.mxu0 %v393
        %v395 = vand.u32 %v271, 4294901760
        %396 = vmatmul.f32.gmra.mxu0 %v395
        %v397 = vpop.f32.mrf.mxu0
        %v398 = vadd.f32 %v374, %v397
        %399 = vdwg.mxu0
        %400 = vmatpush.msra.mxu0 0.0
        %401 = vmatpush.msra.mxu0 0.0
        %402 = vmatpush.msra.mxu0 0.0
        %403 = vmatpush.msra.mxu0 0.0
        %404 = vmatpush.msra.mxu0 0.0
        %405 = vmatpush.msra.mxu0 0.0
        %406 = vmatpush.msra.mxu0 0.0
        %407 = vmatpush.msra.mxu0 0.0
        %408 = vmatpush.msra.mxu0 0.0
        %409 = vmatpush.msra.mxu0 0.0
        %410 = vmatpush.msra.mxu0 0.0
        %411 = vmatpush.msra.mxu0 0.0
        %412 = vmatpush.msra.mxu0 0.0
        %413 = vmatpush.msra.mxu0 0.0
        %414 = vmatpush.msra.mxu0 0.0
        %v415 = vand.u32 %v274, 4294901760
        %416 = vmatpush.msra.mxu0 %v415
        %v417 = vand.u32 %v271, 4294901760
        %418 = vmatmul.f32.gmra.mxu0 %v417
        %v419 = vpop.f32.mrf.mxu0
        %v420 = vadd.f32 %v398, %v419
        %421 = vdwg.mxu0
        %v422 = vmax.f32 %v420, 0.0
        %v423 = vld [vmem:[%s3] sm:$0x3]
        %v424 = vld [vmem:[%s4] sm:$0x1]
        %vm425 = vcmask 15360
        %v427 = vsel %vm425, %v422, 0
        %vm429 = vcmask 1041408
        %v431 = vsel %vm429, %v423, 0
        %433 = vmatpush.msra.mxu0 0.0
        %434 = vmatpush.msra.mxu0 0.0
        %435 = vmatpush.msra.mxu0 0.0
        %436 = vmatpush.msra.mxu0 0.0
        %437 = vmatpush.msra.mxu0 0.0
        %438 = vmatpush.msra.mxu0 0.0
        %439 = vmatpush.msra.mxu0 0.0
        %440 = vmatpush.msra.mxu0 0.0
        %441 = vmatpush.msra.mxu0 0.0
        %442 = vmatpush.msra.mxu0 0.0
        %443 = vmatpush.msra.mxu0 0.0
        %444 = vmatpush.msra.mxu0 0.0
        %445 = vmatpush.msra.mxu0 0.0
        %446 = vmatpush.msra.mxu0 0.0
        %447 = vmatpush.msra.mxu0 0.0
        %v448 = vand.u32 %v431, 4294901760
        %449 = vmatpush.msra.mxu0 %v448
        %v450 = vand.u32 %v427, 4294901760
        %v451 = vsub.f32 %v427, %v450
        %v452 = vand.u32 %v451, 4294901760
        %v453 = vsub.f32 %v451, %v452
        %v454 = vand.u32 %v453, 4294901760
        %455 = vmatmul.f32.gmra.mxu0 %v454
        %v456 = vpop.f32.mrf.mxu0
        %v457 = vadd.f32 %v424, %v456
        %458 = vdwg.mxu0
        %459 = vmatpush.msra.mxu0 0.0
        %460 = vmatpush.msra.mxu0 0.0
        %461 = vmatpush.msra.mxu0 0.0
        %462 = vmatpush.msra.mxu0 0.0
        %463 = vmatpush.msra.mxu0 0.0
        %464 = vmatpush.msra.mxu0 0.0
        %465 = vmatpush.msra.mxu0 0.0
        %466 = vmatpush.msra.mxu0 0.0
        %467 = vmatpush.msra.mxu0 0.0
        %468 = vmatpush.msra.mxu0 0.0
        %469 = vmatpush.msra.mxu0 0.0
        %470 = vmatpush.msra.mxu0 0.0
        %471 = vmatpush.msra.mxu0 0.0
        %472 = vmatpush.msra.mxu0 0.0
        %473 = vmatpush.msra.mxu0 0.0
        %v474 = vand.u32 %v431, 4294901760
        %v475 = vsub.f32 %v431, %v474
        %v476 = vand.u32 %v475, 4294901760
        %v477 = vsub.f32 %v475, %v476
        %v478 = vand.u32 %v477, 4294901760
        %479 = vmatpush.msra.mxu0 %v478
        %v480 = vand.u32 %v427, 4294901760
        %481 = vmatmul.f32.gmra.mxu0 %v480
        %v482 = vpop.f32.mrf.mxu0
        %v483 = vadd.f32 %v457, %v482
        %484 = vdwg.mxu0
        %485 = vmatpush.msra.mxu0 0.0
        %486 = vmatpush.msra.mxu0 0.0
        %487 = vmatpush.msra.mxu0 0.0
        %488 = vmatpush.msra.mxu0 0.0
        %489 = vmatpush.msra.mxu0 0.0
        %490 = vmatpush.msra.mxu0 0.0
        %491 = vmatpush.msra.mxu0 0.0
        %492 = vmatpush.msra.mxu0 0.0
        %493 = vmatpush.msra.mxu0 0.0
        %494 = vmatpush.msra.mxu0 0.0
        %495 = vmatpush.msra.mxu0 0.0
        %496 = vmatpush.msra.mxu0 0.0
        %497 = vmatpush.msra.mxu0 0.0
        %498 = vmatpush.msra.mxu0 0.0
        %499 = vmatpush.msra.mxu0 0.0
        %v500 = vand.u32 %v431, 4294901760
        %v501 = vsub.f32 %v431, %v500
        %502 = vmatpush.msra.mxu0 %v501
        %v503 = vand.u32 %v427, 4294901760
        %v504 = vsub.f32 %v427, %v503
        %505 = vmatmul.f32.gmra.mxu0 %v504
        %v506 = vpop.f32.mrf.mxu0
        %v507 = vadd.f32 %v483, %v506
        %508 = vdwg.mxu0
        %509 = vmatpush.msra.mxu0 0.0
        %510 = vmatpush.msra.mxu0 0.0
        %511 = vmatpush.msra.mxu0 0.0
        %512 = vmatpush.msra.mxu0 0.0
        %513 = vmatpush.msra.mxu0 0.0
        %514 = vmatpush.msra.mxu0 0.0
        %515 = vmatpush.msra.mxu0 0.0
        %516 = vmatpush.msra.mxu0 0.0
        %517 = vmatpush.msra.mxu0 0.0
        %518 = vmatpush.msra.mxu0 0.0
        %519 = vmatpush.msra.mxu0 0.0
        %520 = vmatpush.msra.mxu0 0.0
        %521 = vmatpush.msra.mxu0 0.0
        %522 = vmatpush.msra.mxu0 0.0
        %523 = vmatpush.msra.mxu0 0.0
        %v524 = vand.u32 %v431, 4294901760
        %525 = vmatpush.msra.mxu0 %v524
        %v526 = vand.u32 %v427, 4294901760
        %v527 = vsub.f32 %v427, %v526
        %v528 = vand.u32 %v527, 4294901760
        %529 = vmatmul.f32.gmra.mxu0 %v528
        %v530 = vpop.f32.mrf.mxu0
        %v531 = vadd.f32 %v507, %v530
        %532 = vdwg.mxu0
        %533 = vmatpush.msra.mxu0 0.0
        %534 = vmatpush.msra.mxu0 0.0
        %535 = vmatpush.msra.mxu0 0.0
        %536 = vmatpush.msra.mxu0 0.0
        %537 = vmatpush.msra.mxu0 0.0
        %538 = vmatpush.msra.mxu0 0.0
        %539 = vmatpush.msra.mxu0 0.0
        %540 = vmatpush.msra.mxu0 0.0
        %541 = vmatpush.msra.mxu0 0.0
        %542 = vmatpush.msra.mxu0 0.0
        %543 = vmatpush.msra.mxu0 0.0
        %544 = vmatpush.msra.mxu0 0.0
        %545 = vmatpush.msra.mxu0 0.0
        %546 = vmatpush.msra.mxu0 0.0
        %547 = vmatpush.msra.mxu0 0.0
        %v548 = vand.u32 %v431, 4294901760
        %v549 = vsub.f32 %v431, %v548
        %v550 = vand.u32 %v549, 4294901760
        %551 = vmatpush.msra.mxu0 %v550
        %v552 = vand.u32 %v427, 4294901760
        %553 = vmatmul.f32.gmra.mxu0 %v552
        %v554 = vpop.f32.mrf.mxu0
        %v555 = vadd.f32 %v531, %v554
        %556 = vdwg.mxu0
        %557 = vmatpush.msra.mxu0 0.0
        %558 = vmatpush.msra.mxu0 0.0
        %559 = vmatpush.msra.mxu0 0.0
        %560 = vmatpush.msra.mxu0 0.0
        %561 = vmatpush.msra.mxu0 0.0
        %562 = vmatpush.msra.mxu0 0.0
        %563 = vmatpush.msra.mxu0 0.0
        %564 = vmatpush.msra.mxu0 0.0
        %565 = vmatpush.msra.mxu0 0.0
        %566 = vmatpush.msra.mxu0 0.0
        %567 = vmatpush.msra.mxu0 0.0
        %568 = vmatpush.msra.mxu0 0.0
        %569 = vmatpush.msra.mxu0 0.0
        %570 = vmatpush.msra.mxu0 0.0
        %571 = vmatpush.msra.mxu0 0.0
        %v572 = vand.u32 %v431, 4294901760
        %573 = vmatpush.msra.mxu0 %v572
        %v574 = vand.u32 %v427, 4294901760
        %575 = vmatmul.f32.gmra.mxu0 %v574
        %v576 = vpop.f32.mrf.mxu0
        %v577 = vadd.f32 %v555, %v576
        %578 = vdwg.mxu0
        %v579 = vxor.u32 %v577, 2147483648
        %v580 = vmul.f32 %v579, 1.442695
        %v581 = vpow.pop %v580
        %v582 = vadd.f32 %v581, 1.0
        %v583 = vrcp.pop %v582
        %v584 = vmul.f32 %v582, %v583
        %v585 = vsub.f32 1.0, %v584
        %v586 = vmul.f32 %v583, %v585
        %v587 = vadd.f32 %v583, %v586
        %vm588 = vweird.f32 %v582
        %vm589 = vweird.f32 %v583
        %vm590 = vmor %vm588, %vm589
        %v591 = vsel %vm590, %v583, %v587
        %v592 = vand.u32 2147483647, %v582
        %vm593 = vcmp.eq.f32.partialorder %v592, 8.507059e+37
        %v594 = vand.u32 %v582, 2147483648
        %v595 = vor.u32 1.1754944e-38, %v594
        %v596 = vsel %vm593, %v595, %v591
        %v597 = vmul.f32 1.0, %v596
        %v598 = vperm.slane %v597, 0
        %v599 = vlaneseq
        %v600 = vshrl.u32 %v599, 7
        %602 = vset.pattern.permute.xlu0 %v600
        %603 = vperm.xlu0 %602, %v598
        %v604 = vpop.permute.xlu0 %603
        %v607 = vunpack.c.l.s4 839922192
        %v608 = vunpack.c.0.s8 %v607
        %v609 = vperm.slane %v604, %v608
        %v611 = vmul.f32 %v243, %v609
        %612 = vst [vmem:[%s242] sm:$0xff] %v611
        %s613 = sand.u32 %s140, 1
        %s614 = scalar_lea.sflag [#allocation4], %s613
        %s615 = sand.u32 %s140, 1
        %s616 = smul.addr %s615, 8
        %s617 = scalar_lea.vmem [#allocation5], %s616
        // Predicated region
        $region45: #{tpu_custom_call.1} parent=39 // pred_check
          %p618 = pneg %p150
        $region46: #{tpu_custom_call.1} parent=39 // pred_check_branch
          %620 = sbr.rel (%p618) target = $region48
        $region47: #{tpu_custom_call.1} parent=39 // pred_region
          %622 = vsyncadd %s614, 0
          %s623 = smul.addr %s22, 2
          %s624 = smul.addr %s623, 4
          %s625 = scalar_lea.hbm %s5, %s624
          %s627 = sshll.u32 %s617, 4
          %s628 = int_to_ptr.vmem [resolvable:$true] %s627
          %s629 = sshll.u32 %s625, 4
          %s630 = int_to_ptr.hbm [resolvable:$true] %s629
          %632 = dma.vmem_to_hbm [thread:$0]  %s628, 128, %s630, %s614
        $region48: #{tpu_custom_call.1} parent=39 // pred_fallthru
          _
      $region40: #{tpu_custom_call.1} parent=5 // pred_fallthru
        _
      %p633 = scmp.le.s32.totalorder 2, %s17
      // Predicated region
      $region49: #{tpu_custom_call.1} parent=5 // pred_check
        %p634 = pneg %p633
      $region50: #{tpu_custom_call.1} parent=5 // pred_check_branch
        %636 = sbr.rel (%p634) target = $region52
      $region51: #{tpu_custom_call.1} parent=5 // pred_region
        %s637 = ssub.s32 %s17, 2
        // Predicated region
        $region53: #{tpu_custom_call.1} parent=51 // pred_check
          %p638 = pneg %p156
        $region54: #{tpu_custom_call.1} parent=51 // pred_check_branch
          %640 = sbr.rel (%p638) target = $region56
        $region55: #{tpu_custom_call.1} parent=51 // pred_region
          %s641 = sand.u32 %s141, 1
          %s642 = scalar_lea.sflag [#allocation4], %s641
          %s643 = sand.u32 %s141, 1
          %s644 = smul.addr %s643, 8
          %s645 = scalar_lea.vmem [#allocation5], %s644
          %647 = dma.done %s642, 128
        $region56: #{tpu_custom_call.1} parent=51 // pred_fallthru
          _
      $region52: #{tpu_custom_call.1} parent=5 // pred_fallthru
        _
    $region6: #{tpu_custom_call.1} parent=1 // loop_footer
      %s21 = sadd.s32 1, %s17
    $region7: #{tpu_custom_call.1} parent=1 // loop_footer_branch
      %16 = sbr.rel target = $region3
    $region8: #{tpu_custom_call.1} parent=1 // loop_exit
      _
    %648 = vsyncpa [#allocation3], 1
    %s649 = scalar_lea.sflag [#allocation3], 1
    %650 = vsyncpa %s649, 1
    %651 = vsyncpa [#allocation4], 1
    %s652 = scalar_lea.sflag [#allocation4], 1
    %653 = vsyncpa %s652, 1

</llo_original>
